<compile_context>
chip_gen: v6e
topology: v6e:2x2x1
jax: 0.10.0
libtpu: 0.0.40
codegen_flags: <defaults>
</compile_context>

<pallas_src>
import functools

import jax
import jax.numpy as jnp
from jax.experimental import pallas as pl
from jax.experimental.pallas import tpu as pltpu


# ----------------------------------------------------------------------------
# Kernel
# ----------------------------------------------------------------------------
def attention_kernel(atth_ref, p_ref, feats_ref, mask_ref, wa_ref, out_ref, *, tanh_dtype):
    # atth_ref:  (BB, att_hid)            f32   (precomputed h2att output)
    # p_ref:     (BB, att_size, att_hid)  stream dtype (f32 or bf16)
    # feats_ref: (BB, att_size, rnn)      stream dtype
    # mask_ref:  (BB, att_size)           f32
    # wa_ref:    (1, 1, att_hid)          f32   (alpha_net weight row)
    # out_ref:   (BB, rnn)                f32

    # add + tanh in tanh_dtype (bf16 EUP path on v6e/v7x, f32 on v5e).
    att_h = atth_ref[...].astype(tanh_dtype)                               # (BB, H)
    dot = jnp.tanh(p_ref[...].astype(tanh_dtype) + att_h[:, None, :])      # (BB, A, H)

    # alpha_net as a VPU multiply + cross-lane reduce, accumulated in f32 (wa is f32,
    # promotion upcasts only at the multiply). b_alpha cancels in softmax.
    scores = jnp.sum(dot * wa_ref[...], axis=-1)                           # (BB, A) f32

    # Fused masked softmax:  softmax -> *mask -> renorm  ==  e*mask / sum(e*mask)
    m = jnp.max(scores, axis=-1, keepdims=True)
    e = jnp.exp(scores - m) * mask_ref[...]                                # (BB, A)
    w = e * pl.reciprocal(jnp.sum(e, axis=-1, keepdims=True), approx=True)

    # Weighted sum over the att axis: VPU multiply + sublane reduce, f32 accumulation.
    # (A (1,A)x(A,rnn) MXU matmul per row would waste the 256-wide MXU and serialize
    #  BB weight pushes; the VPU/XLU have slack in this mem-bound kernel.)
    att_res = jnp.sum(w[:, :, None] * feats_ref[...], axis=1)              # (BB, rnn) f32
    out_ref[...] = att_res.astype(out_ref.dtype)


# ----------------------------------------------------------------------------
# Generation-aware sizing helpers
# ----------------------------------------------------------------------------
def _chip_info():
    try:
        kind = jax.devices()[0].device_kind.lower()
    except Exception:
        kind = ""
    is_v5e = ("v5 lite" in kind) or ("v5e" in kind) or ("v5lite" in kind)
    is_v7 = "v7" in kind
    vmem_phys = None
    try:
        vmem_phys = getattr(pltpu.get_tpu_info(), "vmem_capacity_bytes", None)
    except Exception:
        vmem_phys = None
    if vmem_phys is None:
        vmem_phys = (64 if is_v7 else 128) << 20
    return is_v5e, is_v7, int(vmem_phys)


def _select_block(B, A, H, rnn, sb, tanh_itemsize, vmem_cap, is_v7):
    """Pick the batch block BB and padded batch B_pad."""
    def footprint(bb):
        # double-buffered per-step blocks + resident f32/stream intermediates
        blocks = (bb * H * 4            # att_h
                  + bb * A * H * sb     # p_att_feats block
                  + bb * A * rnn * sb   # att_feats block
                  + bb * A * 4          # mask
                  + bb * rnn * 4)       # output
        interm = (bb * A * H * tanh_itemsize   # tanh intermediate
                  + bb * A * H * 4             # f32 product for the score reduce
                  + bb * A * rnn * 4)          # f32 product for the weighted sum
        return 2 * blocks + interm

    if B <= 8:
        # Tiny batch (decode / beam): single full-extent block, grid of 1.
        # TODO(synk): for v7x small-batch decode, add an att_size grid axis with an
        # online-softmax accumulator so both TensorCores get work.
        return B, B

    target = 24 if is_v7 else 64
    bb = 8
    while bb + 8 <= target and footprint(bb + 8) <= vmem_cap:
        bb += 8
    if is_v7:
        # Guarantee >= 2 grid steps so the "parallel" batch axis shards across both TCs.
        while bb > 8 and -(-B // bb) < 2:
            bb -= 8
    b_pad = -(-B // bb) * bb
    return bb, b_pad


# ----------------------------------------------------------------------------
# One-time preparation of the per-image tensors (reused every decode step)
# ----------------------------------------------------------------------------
def prepare_attention_inputs(att_feats, p_att_feats, att_masks=None, *, stream_dtype=jnp.bfloat16):
    B = att_feats.shape[0]
    rnn_size = att_feats.shape[-1]
    att_hid = p_att_feats.shape[-1]
    att_feats = att_feats.reshape(B, -1, rnn_size)
    att_size = att_feats.shape[1]
    p_att_feats = p_att_feats.reshape(B, att_size, att_hid)

    is_v5e, is_v7, vmem_phys = _chip_info()
    # v5e has no bf16 VPU/EUP mode -> keep the tanh path in f32 there.
    tanh_dtype = jnp.float32 if (is_v5e or jnp.dtype(stream_dtype) == jnp.dtype(jnp.float32)) \
        else jnp.bfloat16

    if is_v7:
        vmem_cap = min(56 << 20, int(0.85 * vmem_phys))
    else:
        vmem_cap = min(110 << 20, int(0.85 * vmem_phys))

    sb = jnp.dtype(stream_dtype).itemsize
    ti = jnp.dtype(tanh_dtype).itemsize
    BB, B_pad = _select_block(B, att_size, att_hid, rnn_size, sb, ti, vmem_cap, is_v7)

    if att_masks is None:
        mask = jnp.ones((B, att_size), jnp.float32)
    else:
        mask = att_masks.reshape(B, att_size).astype(jnp.float32)

    if B_pad != B:
        pad = B_pad - B
        p_att_feats = jnp.pad(p_att_feats, ((0, pad), (0, 0), (0, 0)))
        att_feats = jnp.pad(att_feats, ((0, pad), (0, 0), (0, 0)))
        # pad masks with ones so padded rows stay finite (they are sliced off).
        mask = jnp.pad(mask, ((0, pad), (0, 0)), constant_values=1.0)

    # Stream the two large tensors in a narrow dtype; paid ONCE here, not per decode step.
    p_s = p_att_feats.astype(stream_dtype)
    f_s = att_feats.astype(stream_dtype)

    per_step = (BB * att_hid * 4 + BB * att_size * att_hid * sb
                + BB * att_size * rnn_size * sb + BB * att_size * 4 + BB * rnn_size * 4
                + BB * att_size * att_hid * (ti + 4) + BB * att_size * rnn_size * 4)
    vmem_limit = int(min(vmem_cap, max(32 << 20, 2 * per_step)))

    cost = pl.CostEstimate(
        flops=int(2 * B_pad * att_size * (att_hid + rnn_size)),
        transcendentals=int(B_pad * att_size * (att_hid + 1) + B_pad),
        bytes_accessed=int(B_pad * att_size * (att_hid + rnn_size) * sb
                           + B_pad * (att_hid + att_size + rnn_size) * 4),
    )

    return dict(p=p_s, feats=f_s, mask=mask,
                B=B, B_pad=B_pad, BB=BB,
                att_size=att_size, rnn_size=rnn_size, att_hid=att_hid,
                stream_dtype=stream_dtype, tanh_dtype=tanh_dtype,
                vmem_limit=vmem_limit, cost=cost)


# ----------------------------------------------------------------------------
# Per-step attention call (h changes every decode step; prepared tensors are reused)
# ----------------------------------------------------------------------------
def attention_pallas(h, w_h2att, b_h2att, w_alpha, b_alpha, prepared):
    """`b_alpha` is accepted for API parity; a uniform logit shift cancels in softmax."""
    del b_alpha
    B, B_pad, BB = prepared["B"], prepared["B_pad"], prepared["BB"]
    A, rnn_size, att_hid = prepared["att_size"], prepared["rnn_size"], prepared["att_hid"]

    # Hoisted h2att linear: one full-batch GEMM in XLA (MXU efficient).
    att_h = (h.astype(jnp.float32) @ w_h2att.T.astype(jnp.float32)
             + b_h2att.astype(jnp.float32))                                # (B, att_hid)
    if B_pad != B:
        att_h = jnp.pad(att_h, ((0, B_pad - B), (0, 0)))

    wa = w_alpha.reshape(1, 1, att_hid).astype(jnp.float32)

    kernel = functools.partial(attention_kernel, tanh_dtype=prepared["tanh_dtype"])
    out = pl.pallas_call(
        kernel,
        out_shape=jax.ShapeDtypeStruct((B_pad, rnn_size), jnp.float32),
        grid_spec=pltpu.PrefetchScalarGridSpec(
            num_scalar_prefetch=0,
            grid=(B_pad // BB,),
            in_specs=[
                pl.BlockSpec((BB, att_hid),             lambda b: (b, 0)),      # att_h
                pl.BlockSpec((BB, A, att_hid),          lambda b: (b, 0, 0)),   # p_att_feats
                pl.BlockSpec((BB, A, rnn_size),         lambda b: (b, 0, 0)),   # att_feats
                pl.BlockSpec((BB, A),                   lambda b: (b, 0)),      # mask
                pl.BlockSpec((1, 1, att_hid),           lambda b: (0, 0, 0)),   # W_alpha row
            ],
            out_specs=pl.BlockSpec((BB, rnn_size), lambda b: (b, 0)),
        ),
        compiler_params=pltpu.CompilerParams(
            dimension_semantics=("parallel",),
            vmem_limit_bytes=prepared["vmem_limit"]),
        cost_estimate=prepared["cost"],
    )(att_h, prepared["p"], prepared["feats"], prepared["mask"], wa)

    return out[:B]


def attention_forward(h, att_feats, p_att_feats, att_masks,
                      w_h2att, b_h2att, w_alpha, b_alpha, *, stream_dtype=jnp.bfloat16):
    """Convenience one-shot wrapper matching the PyTorch module signature."""
    prepared = prepare_attention_inputs(att_feats, p_att_feats, att_masks,
                                        stream_dtype=stream_dtype)
    return attention_pallas(h, w_h2att, b_h2att, w_alpha, b_alpha, prepared)


# ----------------------------------------------------------------------------
# Pure-JAX reference mirroring the PyTorch forward
# ----------------------------------------------------------------------------
def attention_ref(h, att_feats, p_att_feats, att_masks,
                  w_h2att, b_h2att, w_alpha, b_alpha):
    att_h = h @ w_h2att.T + b_h2att                     # (B, att_hid)
    dot = jnp.tanh(p_att_feats + att_h[:, None, :])     # (B, att_size, att_hid)
    scores = (dot @ w_alpha.T + b_alpha)[..., 0]        # (B, att_size)
    weight = jax.nn.softmax(scores, axis=1)
    if att_masks is not None:
        weight = weight * att_masks.astype(jnp.float32)
        weight = weight / jnp.sum(weight, axis=1, keepdims=True)
    return jnp.einsum("ba,bad->bd", weight, att_feats)


if __name__ == "__main__":
    key = jax.random.PRNGKey(0)
    ks = jax.random.split(key, 8)

    B = 2
    att_size = 8
    rnn_size = 32
    att_hid = 32

    h = jax.random.normal(ks[0], (B, rnn_size), jnp.float32)
    att_feats = jax.random.normal(ks[1], (B, att_size, rnn_size), jnp.float32)
    p_att_feats = jax.random.normal(ks[2], (B, att_size, att_hid), jnp.float32)
    # binary mask (last position masked out); all-ones reproduces att_masks=None
    att_masks = jnp.concatenate(
        [jnp.ones((B, att_size - 1), jnp.float32),
         jnp.zeros((B, 1), jnp.float32)], axis=1)

    # deterministic parameter init (nn.Linear shapes: weight (out, in), bias (out,))
    w_h2att = 0.1 * jax.random.normal(ks[3], (att_hid, rnn_size), jnp.float32)
    b_h2att = 0.1 * jax.random.normal(ks[4], (att_hid,), jnp.float32)
    w_alpha = 0.1 * jax.random.normal(ks[5], (1, att_hid), jnp.float32)
    b_alpha = 0.1 * jax.random.normal(ks[6], (1,), jnp.float32)

    ref = attention_ref(h, att_feats, p_att_feats, att_masks,
                        w_h2att, b_h2att, w_alpha, b_alpha)

    # f32 streaming path: tight check (approx reciprocal bounds the deviation)
    out_f32 = attention_forward(h, att_feats, p_att_feats, att_masks,
                                w_h2att, b_h2att, w_alpha, b_alpha,
                                stream_dtype=jnp.float32)
    out_f32 = jax.block_until_ready(out_f32)
    assert out_f32.shape == (B, rnn_size)
    assert jnp.allclose(out_f32, ref, atol=2e-3, rtol=2e-3), (out_f32, ref)

    # bf16 streaming path (default): prepare once, reuse across two "decode steps"
    prepared = prepare_attention_inputs(att_feats, p_att_feats, att_masks)
    out_bf16 = attention_pallas(h, w_h2att, b_h2att, w_alpha, b_alpha, prepared)
    out_bf16 = jax.block_until_ready(out_bf16)
    assert out_bf16.shape == (B, rnn_size)
    assert jnp.allclose(out_bf16, ref, atol=5e-2, rtol=5e-2), (out_bf16, ref)

    h2 = jax.random.normal(ks[7], (B, rnn_size), jnp.float32)
    ref2 = attention_ref(h2, att_feats, p_att_feats, att_masks,
                         w_h2att, b_h2att, w_alpha, b_alpha)
    out2 = attention_pallas(h2, w_h2att, b_h2att, w_alpha, b_alpha, prepared)
    out2 = jax.block_until_ready(out2)
    assert jnp.allclose(out2, ref2, atol=5e-2, rtol=5e-2), (out2, ref2)

    print("KERNEL_OK")
</pallas_src>

<mosaic_0001>
module attributes {stable_mosaic.version = 11 : i64} {
  func.func @attention_kernel(%arg0: i32, %arg1: memref<2x32xf32, #tpu.memory_space<vmem>>, %arg2: memref<2x8x32xf32, #tpu.memory_space<vmem>>, %arg3: memref<2x8x32xf32, #tpu.memory_space<vmem>>, %arg4: memref<2x8xf32, #tpu.memory_space<vmem>>, %arg5: memref<1x1x32xf32, #tpu.memory_space<vmem>>, %arg6: memref<2x32xf32, #tpu.memory_space<vmem>>) attributes {dimension_semantics = [#tpu.dimension_semantics<parallel>], iteration_bounds = array<i64: 1>, scalar_prefetch = 0 : i64, scratch_operands = 0 : i64, tpu.core_type = #tpu.core_type<tc>, window_params = [{transform_indices = @transform_0, window_bounds = array<i64: 2, 32>}, {transform_indices = @transform_1, window_bounds = array<i64: 2, 8, 32>}, {transform_indices = @transform_2, window_bounds = array<i64: 2, 8, 32>}, {transform_indices = @transform_3, window_bounds = array<i64: 2, 8>}, {pipeline_mode = #tpu.pipeline_mode<synchronous>, transform_indices = @transform_4, window_bounds = array<i64: 1, 1, 32>}, {transform_indices = @transform_5, window_bounds = array<i64: 2, 32>}]} {
    %c0 = arith.constant 0 : index
    %c0_0 = arith.constant 0 : index
    %0 = vector.load %arg1[%c0, %c0_0] : memref<2x32xf32, #tpu.memory_space<vmem>>, vector<2x32xf32>
    %c0_1 = arith.constant 0 : index
    %c0_2 = arith.constant 0 : index
    %c0_3 = arith.constant 0 : index
    %1 = vector.load %arg2[%c0_1, %c0_2, %c0_3] : memref<2x8x32xf32, #tpu.memory_space<vmem>>, vector<2x8x32xf32>
    %2 = vector.shape_cast %0 : vector<2x32xf32> to vector<2x1x32xf32>
    %3 = vector.broadcast %2 : vector<2x1x32xf32> to vector<2x8x32xf32>
    %4 = arith.addf %1, %3 : vector<2x8x32xf32>
    %5 = math.tanh %4 : vector<2x8x32xf32>
    %c0_4 = arith.constant 0 : index
    %c0_5 = arith.constant 0 : index
    %c0_6 = arith.constant 0 : index
    %6 = vector.load %arg5[%c0_4, %c0_5, %c0_6] : memref<1x1x32xf32, #tpu.memory_space<vmem>>, vector<1x1x32xf32>
    %7 = vector.broadcast %6 : vector<1x1x32xf32> to vector<2x8x32xf32>
    %8 = arith.mulf %5, %7 : vector<2x8x32xf32>
    %cst = arith.constant dense<0.000000e+00> : vector<2x8xf32>
    %9 = vector.multi_reduction <add>, %8, %cst [2] : vector<2x8x32xf32> to vector<2x8xf32>
    %cst_7 = arith.constant dense<0xFF800000> : vector<2xf32>
    %10 = vector.multi_reduction <maximumf>, %9, %cst_7 [1] : vector<2x8xf32> to vector<2xf32>
    %11 = vector.shape_cast %10 : vector<2xf32> to vector<2x1xf32>
    %12 = vector.broadcast %11 : vector<2x1xf32> to vector<2x8xf32>
    %13 = arith.subf %9, %12 : vector<2x8xf32>
    %14 = math.exp %13 : vector<2x8xf32>
    %c0_8 = arith.constant 0 : index
    %c0_9 = arith.constant 0 : index
    %15 = vector.load %arg4[%c0_8, %c0_9] : memref<2x8xf32, #tpu.memory_space<vmem>>, vector<2x8xf32>
    %16 = arith.mulf %14, %15 : vector<2x8xf32>
    %cst_10 = arith.constant dense<0.000000e+00> : vector<2xf32>
    %17 = vector.multi_reduction <add>, %16, %cst_10 [1] : vector<2x8xf32> to vector<2xf32>
    %18 = vector.shape_cast %17 : vector<2xf32> to vector<2x1xf32>
    %19 = tpu.reciprocal %18 {approx = true} : vector<2x1xf32> -> vector<2x1xf32>
    %20 = vector.broadcast %19 : vector<2x1xf32> to vector<2x8xf32>
    %21 = arith.mulf %16, %20 : vector<2x8xf32>
    %22 = vector.shape_cast %21 : vector<2x8xf32> to vector<2x8x1xf32>
    %c0_11 = arith.constant 0 : index
    %c0_12 = arith.constant 0 : index
    %c0_13 = arith.constant 0 : index
    %23 = vector.load %arg3[%c0_11, %c0_12, %c0_13] : memref<2x8x32xf32, #tpu.memory_space<vmem>>, vector<2x8x32xf32>
    %24 = vector.broadcast %22 : vector<2x8x1xf32> to vector<2x8x32xf32>
    %25 = arith.mulf %24, %23 : vector<2x8x32xf32>
    %cst_14 = arith.constant dense<0.000000e+00> : vector<2x32xf32>
    %26 = vector.multi_reduction <add>, %25, %cst_14 [1] : vector<2x8x32xf32> to vector<2x32xf32>
    %c0_15 = arith.constant 0 : index
    %c0_16 = arith.constant 0 : index
    %27 = vector.load %arg6[%c0_15, %c0_16] : memref<2x32xf32, #tpu.memory_space<vmem>>, vector<2x32xf32>
    tpu.vector_store %arg6[%c0_15, %c0_16], %26 {strides = array<i32>} : memref<2x32xf32, #tpu.memory_space<vmem>>, vector<2x32xf32>,
    return
  }
  func.func @transform_0(%arg0: i32) -> (i32, i32) {
    %c0_i32 = arith.constant 0 : i32
    %c0_i32_0 = arith.constant 0 : i32
    return %arg0, %c0_i32 : i32, i32
  }
  func.func @transform_1(%arg0: i32) -> (i32, i32, i32) {
    %c0_i32 = arith.constant 0 : i32
    %c0_i32_0 = arith.constant 0 : i32
    %c0_i32_1 = arith.constant 0 : i32
    return %arg0, %c0_i32, %c0_i32_0 : i32, i32, i32
  }
  func.func @transform_2(%arg0: i32) -> (i32, i32, i32) {
    %c0_i32 = arith.constant 0 : i32
    %c0_i32_0 = arith.constant 0 : i32
    %c0_i32_1 = arith.constant 0 : i32
    return %arg0, %c0_i32, %c0_i32_0 : i32, i32, i32
  }
  func.func @transform_3(%arg0: i32) -> (i32, i32) {
    %c0_i32 = arith.constant 0 : i32
    %c0_i32_0 = arith.constant 0 : i32
    return %arg0, %c0_i32 : i32, i32
  }
  func.func @transform_4(%arg0: i32) -> (i32, i32, i32) {
    %c0_i32 = arith.constant 0 : i32
    %c0_i32_0 = arith.constant 0 : i32
    %c0_i32_1 = arith.constant 0 : i32
    %c0_i32_2 = arith.constant 0 : i32
    return %c0_i32, %c0_i32_0, %c0_i32_1 : i32, i32, i32
  }
  func.func @transform_5(%arg0: i32) -> (i32, i32) {
    %c0_i32 = arith.constant 0 : i32
    %c0_i32_0 = arith.constant 0 : i32
    return %arg0, %c0_i32 : i32, i32
  }
}

</mosaic_0001>

<llo_original>
// kernel: tpu_custom_call.1
$region0: #{tpu_custom_call.1}
  #allocation0 [shape = 'u32[]', space=smem, size = 0x4, offset = 0x4, fixed_abs, tag = 'smem constant byte address 0x4 - core index']
  #allocation1 [shape = 'u32[144,128]{1,0:T(1,128)}', space=vmem, size = 0x12000, scoped, tag = 'internal scratch']
  %s0 = inlined_call_operand.hbm [shape: f32[2,32], index: 0, kind: input, shape index: {}]
  %s1 = inlined_call_operand.hbm [shape: f32[2,8,32], index: 1, kind: input, shape index: {}]
  %s2 = inlined_call_operand.hbm [shape: f32[2,8,32], index: 2, kind: input, shape index: {}]
  %s3 = inlined_call_operand.vmem [shape: f32[2,8], index: 3, kind: input, shape index: {}]
  %s4 = inlined_call_operand.vmem [shape: f32[1,1,32], index: 4, kind: input, shape index: {}]
  %s5 = inlined_call_operand.hbm [shape: f32[2,32], index: 5, kind: output, shape index: {}]
  %s6 = sld [smem:[#allocation0]]
  $region42: #{tpu_custom_call.1} parent=0
    _
  %s8 = ssub.s32 1, %s6
  %s9 = scalar_select 0, %s8, %s6
  $region1: #{tpu_custom_call.1} parent=0
    #allocation2 [shape = 'u8[1024]{0}', space=vmem, size = 0x400, scoped, tag = 'input window, operand 0, single buffered']
    #allocation3 [shape = 's32[1]{0}', space=sflag, size = 0x4, scoped, tag = 'scoped memory for tpu_custom_call.1']
    #allocation4 [shape = 's32[1]{0}', space=sflag, size = 0x4, scoped, tag = 'scoped memory for tpu_custom_call.1']
    #allocation5 [shape = 'u8[8192]{0}', space=vmem, size = 0x2000, scoped, tag = 'input window, operand 1, single buffered']
    #allocation6 [shape = 's32[1]{0}', space=sflag, size = 0x4, scoped, tag = 'scoped memory for tpu_custom_call.1']
    #allocation7 [shape = 'u8[8192]{0}', space=vmem, size = 0x2000, scoped, tag = 'input window, operand 2, single buffered']
    #allocation8 [shape = 'u8[1024]{0}', space=vmem, size = 0x400, scoped, tag = 'output window, operand 0, single buffered']
    %10 = vsyncpa [#allocation3], 0
    %11 = vsyncpa [#allocation6], 0
    %12 = vsyncpa [#allocation4], 0
    // Predicated region
    $region2: #{tpu_custom_call.1} parent=1 // pred_check
      _
    $region3: #{tpu_custom_call.1} parent=1 // pred_check_branch
      %14 = sbr.rel (0) target = $region5
    $region4: #{tpu_custom_call.1} parent=1 // pred_region
      %s16 = ssub.s32 32, 32
      %17 = vsyncadd [#allocation3], %s16
      %s19 = sshll.u32 [#allocation2], 4
      %s20 = int_to_ptr.vmem [resolvable:$true] %s19
      %22 = dma.hbm_to_vmem [thread:$0]  %s0, 32, %s20, [#allocation3]
    $region5: #{tpu_custom_call.1} parent=1 // pred_fallthru
      _
    // Predicated region
    $region6: #{tpu_custom_call.1} parent=1 // pred_check
      _
    $region7: #{tpu_custom_call.1} parent=1 // pred_check_branch
      %24 = sbr.rel (0) target = $region9
    $region8: #{tpu_custom_call.1} parent=1 // pred_region
      %s26 = ssub.s32 256, 256
      %27 = vsyncadd [#allocation6], %s26
      %s28 = sshll.u32 [#allocation5], 4
      %s29 = int_to_ptr.vmem [resolvable:$true] %s28
      %34 = dma.hbm_to_vmem [thread:$0]  %s1, 256, %s29, [#allocation6], 128, 128, 8
    $region9: #{tpu_custom_call.1} parent=1 // pred_fallthru
      _
    // Predicated region
    $region10: #{tpu_custom_call.1} parent=1 // pred_check
      _
    $region11: #{tpu_custom_call.1} parent=1 // pred_check_branch
      %36 = sbr.rel (0) target = $region13
    $region12: #{tpu_custom_call.1} parent=1 // pred_region
      %s38 = ssub.s32 256, 256
      %39 = vsyncadd [#allocation6], %s38
      %s40 = sshll.u32 [#allocation7], 4
      %s41 = int_to_ptr.vmem [resolvable:$true] %s40
      %46 = dma.hbm_to_vmem [thread:$0]  %s2, 256, %s41, [#allocation6], 128, 128, 8
    $region13: #{tpu_custom_call.1} parent=1 // pred_fallthru
      _
    // Predicated region
    $region14: #{tpu_custom_call.1} parent=1 // pred_check
      _
    $region15: #{tpu_custom_call.1} parent=1 // pred_check_branch
      %48 = sbr.rel (0) target = $region17
    $region16: #{tpu_custom_call.1} parent=1 // pred_region
      _
    $region17: #{tpu_custom_call.1} parent=1 // pred_fallthru
      _
    // Predicated region
    $region18: #{tpu_custom_call.1} parent=1 // pred_check
      _
    $region19: #{tpu_custom_call.1} parent=1 // pred_check_branch
      %50 = sbr.rel (0) target = $region21
    $region20: #{tpu_custom_call.1} parent=1 // pred_region
      _
    $region21: #{tpu_custom_call.1} parent=1 // pred_fallthru
      _
    // Predicated region
    $region22: #{tpu_custom_call.1} parent=1 // pred_check
      _
    $region23: #{tpu_custom_call.1} parent=1 // pred_check_branch
      %52 = sbr.rel (0) target = $region25
    $region24: #{tpu_custom_call.1} parent=1 // pred_region
      %53 = dma.done [#allocation3], 32
    $region25: #{tpu_custom_call.1} parent=1 // pred_fallthru
      _
    // Predicated region
    $region26: #{tpu_custom_call.1} parent=1 // pred_check
      _
    $region27: #{tpu_custom_call.1} parent=1 // pred_check_branch
      %55 = sbr.rel (0) target = $region29
    $region28: #{tpu_custom_call.1} parent=1 // pred_region
      %56 = dma.done [#allocation6], 256
    $region29: #{tpu_custom_call.1} parent=1 // pred_fallthru
      _
    // Predicated region
    $region30: #{tpu_custom_call.1} parent=1 // pred_check
      _
    $region31: #{tpu_custom_call.1} parent=1 // pred_check_branch
      %58 = sbr.rel (0) target = $region33
    $region32: #{tpu_custom_call.1} parent=1 // pred_region
      %59 = dma.done [#allocation6], 256
    $region33: #{tpu_custom_call.1} parent=1 // pred_fallthru
      _
    %v60 = vld [vmem:[#allocation2] sm:$0x3]
    %v61 = vld [vmem:[#allocation5] sm:$0xff]
    %v62 = vld [vmem:[#allocation5 + $0x8] sm:$0xff]
    %v65 = vunpack.c.l.s4 1966171168
    %v66 = vunpack.c.0.s8 %v65
    %v67 = vlaneseq
    %v68 = vshrl.u32 %v67, 7
    %v69 = vsub.s32 %v66, %v68
    %v70 = vrot.slane %v60, %v69
    %v71 = vcombine.high %v70, %v70
    %v73 = vunpack.c.l.s4 1966171168
    %v74 = vunpack.c.0.s8 %v73
    %v75 = vlaneseq
    %v76 = vshrl.u32 %v75, 7
    %v77 = vsub.s32 %v74, %v76
    %v78 = vrot.slane %v70, %v77
    %v80 = vunpack.c.l.s4 1966171168
    %v81 = vunpack.c.0.s8 %v80
    %v82 = vlaneseq
    %v83 = vshrl.u32 %v82, 7
    %v84 = vsub.s32 %v81, %v83
    %v85 = vrot.slane %v71, %v84
    %v86 = vlaneseq
    %v87 = vshrl.u32 %v86, 7
    %v88 = vsub.s32 0, %v87
    %v89 = vrot.slane %v78, %v88
    %v90 = vlaneseq
    %v91 = vshrl.u32 %v90, 7
    %v92 = vsub.s32 0, %v91
    %v93 = vrot.slane %v85, %v92
    %v96 = vadd.f32 %v61, %v89
    %v97 = vadd.f32 %v62, %v93
    %v98 = vtanh.pop %v96
    %v99 = vtanh.pop %v97
    %v100 = vld [vmem:[%s4] sm:$0x1]
    %v102 = vlaneseq
    %v103 = vshrl.u32 %v102, 7
    %v104 = vsub.s32 0, %v103
    %v105 = vrot.slane %v100, %v104
    %v107 = vmul.f32 %v98, %v105
    %v108 = vmul.f32 %v99, %v105
    %vm109 = vcmask 261120
    %v110 = vsel %vm109, %v107, 0.0
    %111 = vadd.xlane.f32.xlu0 %v110
    %v112 = vpop.xlane.xlu0 %111
    %v113 = vsel %vm109, %v108, 0.0
    %114 = vadd.xlane.f32.xlu0 %v113
    %v115 = vpop.xlane.xlu0 %114
    %v118 = vlaneseq
    %v119 = vand.u32 %v118, 127
    %v120 = vlaneseq
    %v121 = vshrl.u32 %v120, 7
    %v122 = vsub.s32 %v119, %v121
    %v123 = vrot.slane %v112, %v122
    %v124 = vlaneseq
    %v125 = vshrl.u32 %v124, 7
    %v126 = vsub.s32 %v119, %v125
    %v127 = vrot.slane %v115, %v126
    %vm128 = vcmask 1041409
    %v129 = vsel %vm128, %v127, %v123
    %vm131 = vcmask 58368
    %v132 = vsel %vm131, %v129, -inf
    %133 = vmax.xlane.f32.xlu0 %v132
    %v134 = vpop.xlane.xlu0 %133
    %v136 = vlaneseq
    %v137 = vshrl.u32 %v136, 7
    %v138 = vsub.s32 0, %v137
    %v139 = vrot.slane %v134, %v138
    %v140 = vlaneseq
    %v141 = vshrl.u32 %v140, 7
    %v142 = vsub.s32 1, %v141
    %v143 = vrot.slane %v134, %v142
    %v146 = vsub.f32 %v112, %v139
    %v147 = vsub.f32 %v115, %v143
    %v148 = vmul.f32 %v146, 1.442695
    %v149 = vpow.pop %v148
    %v150 = vmul.f32 %v147, 1.442695
    %v151 = vpow.pop %v150
    %v152 = vld [vmem:[%s3] sm:$0x3]
    %v154 = vlaneseq
    %v155 = vshrl.u32 %v154, 7
    %v156 = vsub.s32 0, %v155
    %v157 = vrot.slane %v152, %v156
    %159 = vbcast.lane.b32.xlu0 %v157, 256
    %v160 = vpop.permute.xlu0 %159
    %v161 = vlaneseq
    %v162 = vshrl.u32 %v161, 7
    %v163 = vsub.s32 1, %v162
    %v164 = vrot.slane %v152, %v163
    %166 = vbcast.lane.b32.xlu0 %v164, 256
    %v167 = vpop.permute.xlu0 %166
    %v170 = vmul.f32 %v149, %v160
    %v171 = vmul.f32 %v151, %v167
    %174 = vset.pattern.permute.xlu0 0
    %175 = vperm.xlu0 %174, %v170
    %v176 = vpop.permute.xlu0 %175
    %177 = vset.pattern.permute.xlu0 0
    %178 = vperm.xlu0 %177, %v171
    %v179 = vpop.permute.xlu0 %178
    %v180 = vlaneseq
    %v181 = vshrl.u32 %v180, 7
    %v182 = vsub.s32 %v119, %v181
    %v183 = vrot.slane %v176, %v182
    %v184 = vlaneseq
    %v185 = vshrl.u32 %v184, 7
    %v186 = vsub.s32 %v119, %v185
    %v187 = vrot.slane %v179, %v186
    %v188 = vsel %vm128, %v187, %v183
    %v190 = vsel %vm131, %v188, 0.0
    %191 = vadd.xlane.f32.xlu0 %v190
    %v192 = vpop.xlane.xlu0 %191
    %v193 = vrcp.pop %v192
    %v195 = vlaneseq
    %v196 = vshrl.u32 %v195, 7
    %v197 = vsub.s32 0, %v196
    %v198 = vrot.slane %v193, %v197
    %v199 = vlaneseq
    %v200 = vshrl.u32 %v199, 7
    %v201 = vsub.s32 1, %v200
    %v202 = vrot.slane %v193, %v201
    %v205 = vmul.f32 %v170, %v198
    %v206 = vmul.f32 %v171, %v202
    %v207 = vld [vmem:[#allocation7] sm:$0xff]
    %v208 = vld [vmem:[#allocation7 + $0x8] sm:$0xff]
    %210 = vset.pattern.permute.xlu0 0
    %211 = vperm.xlu0 %210, %v205
    %v212 = vpop.permute.xlu0 %211
    %215 = vset.pattern.permute.xlu0 0
    %216 = vperm.xlu0 %215, %v206
    %v217 = vpop.permute.xlu0 %216
    %v219 = vmul.f32 %v212, %v207
    %v220 = vmul.f32 %v217, %v208
    %v221 = vsel %vm109, %v219, 0.0
    %v222 = vrot.slane %v221, 4
    %v223 = vadd.f32 %v221, %v222
    %v224 = vrot.slane %v223, 2
    %v225 = vadd.f32 %v223, %v224
    %v226 = vrot.slane %v225, 1
    %v227 = vadd.f32 %v225, %v226
    %v228 = vsel %vm109, %v220, 0.0
    %v229 = vrot.slane %v228, 4
    %v230 = vadd.f32 %v228, %v229
    %v231 = vrot.slane %v230, 2
    %v232 = vadd.f32 %v230, %v231
    %v233 = vrot.slane %v232, 1
    %v234 = vadd.f32 %v232, %v233
    %v237 = vsel %vm128, %v234, %v227
    %vm239 = vcmask 254976
    %240 = vst.msk [vmem:[#allocation8] sm:$0x3] %vm239, %v237
    // Predicated region
    $region34: #{tpu_custom_call.1} parent=1 // pred_check
      _
    $region35: #{tpu_custom_call.1} parent=1 // pred_check_branch
      %242 = sbr.rel (0) target = $region37
    $region36: #{tpu_custom_call.1} parent=1 // pred_region
      %s244 = ssub.s32 32, 32
      %245 = vsyncadd [#allocation4], %s244
      %s247 = sshll.u32 [#allocation8], 4
      %s248 = int_to_ptr.vmem [resolvable:$true] %s247
      %250 = dma.vmem_to_hbm [thread:$0]  %s248, 32, %s5, [#allocation4]
    $region37: #{tpu_custom_call.1} parent=1 // pred_fallthru
      _
    // Predicated region
    $region38: #{tpu_custom_call.1} parent=1 // pred_check
      _
    $region39: #{tpu_custom_call.1} parent=1 // pred_check_branch
      %252 = sbr.rel (0) target = $region41
    $region40: #{tpu_custom_call.1} parent=1 // pred_region
      %253 = dma.done [#allocation4], 32
    $region41: #{tpu_custom_call.1} parent=1 // pred_fallthru
      _
    %254 = vsyncpa [#allocation3], 1
    %255 = vsyncpa [#allocation6], 1
    %256 = vsyncpa [#allocation4], 1

</llo_original>
